<compile_context>
chip_gen: v5e
topology: v5e:2x2
jax: 0.10.0
libtpu: 0.0.40
codegen_flags: <defaults>
</compile_context>

<pallas_src>
import jax
import jax.numpy as jnp
from jax.experimental import pallas as pl
from jax.experimental.pallas import tpu as pltpu


def _round_up(x, m):
    return (x + m - 1) // m * m


def _gen_kernel(z_ref, w1_ref, b1_ref, w2_ref, b2_ref, o_ref, h_ref):
    """Fused two-layer MLP generator.

    Grid = (batch tiles i, output tiles j).  The hidden activation for the
    current batch tile is computed once (at j == 0) and cached in VMEM scratch,
    then reused while sweeping the wide output dimension.

    z_ref:  [tB, Zp]  bf16 latent tile        (block index depends on i only)
    w1_ref: [Zp, Hp]  bf16 first weight       (same block every step: resident)
    b1_ref: [1,  Hp]  f32  first bias         (resident)
    w2_ref: [Hp, tO]  bf16 second weight tile (block index depends on j only)
    b2_ref: [1,  tO]  f32  second bias tile
    o_ref:  [tB, tO]  f32  output tile        (lane-dense: tO multiple of 128)
    h_ref:  [tB, Hp]  bf16 scratch: cached hidden activation
    """
    j = pl.program_id(1)

    @pl.when(j == 0)
    def _():
        # First layer: bf16 into the MXU, f32 accumulation, f32 epilogue.
        h = jnp.dot(z_ref[...], w1_ref[...], preferred_element_type=jnp.float32)
        h = h + b1_ref[...]
        h = jnp.where(h > 0, h, 0.2 * h)          # LeakyReLU(0.2) on the VPU
        h_ref[...] = h.astype(h_ref.dtype)        # cache bf16 for 2nd MXU pass

    # Second layer: reuse cached hidden, f32 accumulate, tanh on the EUP.
    y = jnp.dot(h_ref[...], w2_ref[...], preferred_element_type=jnp.float32)
    y = y + b2_ref[...]
    o_ref[...] = jnp.tanh(y).astype(o_ref.dtype)


def _vmem_limit_bytes(tB, Zp, Hp, tO):
    """Conservative VMEM budget from the actual (double-buffered) tile sizes."""
    def tile_bytes(rows, cols, itemsize):
        return _round_up(max(rows, 1), 8) * _round_up(cols, 128) * itemsize

    total = 0
    total += 2 * tile_bytes(tB, Zp, 2)    # z tile (bf16)
    total += 2 * tile_bytes(Zp, Hp, 2)    # W1 (bf16)
    total += 2 * tile_bytes(1, Hp, 4)     # b1 (f32)
    total += 2 * tile_bytes(Hp, tO, 2)    # W2 tile (bf16)
    total += 2 * tile_bytes(1, tO, 4)     # b2 tile (f32)
    total += 2 * tile_bytes(tB, tO, 4)    # output tile (f32)
    total += tile_bytes(tB, Hp, 2)        # hidden scratch (bf16)
    # 2x headroom for compiler temporaries; cap well below v7x's 64 MiB VMEM.
    return int(min(32 * 1024 * 1024, max(2 * total, 1 * 1024 * 1024)))


def generator_forward(z, w1, b1, w2, b2, *, max_tb=128, max_to=256):
    """z: [B, latent_dim] f32.  Returns [B, out_dim] f32 in (-1, 1)."""
    B, Z = z.shape
    H = w1.shape[1]
    O = w2.shape[1]

    # Pad to MXU / vreg friendly sizes (lanes multiples of 128, batch mult of 8).
    Zp = _round_up(Z, 128)
    Hp = _round_up(H, 128)
    Op = _round_up(O, 128)
    tB = max_tb if B > max_tb else _round_up(B, 8)
    Bp = _round_up(B, tB)
    # Output tile: as wide as possible (lane-dense stores) while dividing Op.
    tO = max_to if Op % max_to == 0 else 128
    tO = min(tO, Op)

    zp = jnp.zeros((Bp, Zp), jnp.bfloat16).at[:B, :Z].set(z.astype(jnp.bfloat16))
    w1p = jnp.zeros((Zp, Hp), jnp.bfloat16).at[:Z, :H].set(w1.astype(jnp.bfloat16))
    b1p = jnp.zeros((1, Hp), jnp.float32).at[0, :H].set(b1.astype(jnp.float32))
    w2p = jnp.zeros((Hp, Op), jnp.bfloat16).at[:H, :O].set(w2.astype(jnp.bfloat16))
    b2p = jnp.zeros((1, Op), jnp.float32).at[0, :O].set(b2.astype(jnp.float32))

    grid = (Bp // tB, Op // tO)

    out = pl.pallas_call(
        _gen_kernel,
        out_shape=jax.ShapeDtypeStruct((Bp, Op), jnp.float32),
        grid_spec=pltpu.PrefetchScalarGridSpec(
            num_scalar_prefetch=0,
            grid=grid,
            in_specs=[
                pl.BlockSpec((tB, Zp), lambda i, j: (i, 0)),   # z: per batch tile
                pl.BlockSpec((Zp, Hp), lambda i, j: (0, 0)),   # W1: resident
                pl.BlockSpec((1, Hp), lambda i, j: (0, 0)),    # b1: resident
                pl.BlockSpec((Hp, tO), lambda i, j: (0, j)),   # W2: per output tile
                pl.BlockSpec((1, tO), lambda i, j: (0, j)),    # b2: per output tile
            ],
            out_specs=pl.BlockSpec((tB, tO), lambda i, j: (i, j)),
            scratch_shapes=[pltpu.VMEM((tB, Hp), jnp.bfloat16)],
        ),
        compiler_params=pltpu.CompilerParams(
            dimension_semantics=("parallel", "arbitrary"),
            vmem_limit_bytes=_vmem_limit_bytes(tB, Zp, Hp, tO),
        ),
    )(zp, w1p, b1p, w2p, b2p)

    return out[:B, :O]


def make_params(key, latent_dim, hidden_dim, out_dim):
    """Deterministic synthetic parameters (shapes follow nn.Linear, stored (in, out))."""
    k1, k2, k3, k4 = jax.random.split(key, 4)
    s1 = 1.0 / jnp.sqrt(jnp.float32(latent_dim))
    s2 = 1.0 / jnp.sqrt(jnp.float32(hidden_dim))
    w1 = jax.random.normal(k1, (latent_dim, hidden_dim), dtype=jnp.float32) * s1
    b1 = jax.random.normal(k3, (hidden_dim,), dtype=jnp.float32) * 0.1
    w2 = jax.random.normal(k2, (hidden_dim, out_dim), dtype=jnp.float32) * s2
    b2 = jax.random.normal(k4, (out_dim,), dtype=jnp.float32) * 0.1
    return w1, b1, w2, b2


if __name__ == "__main__":
    key = jax.random.PRNGKey(0)
    kz, kp = jax.random.split(key)

    # Small shapes consistent with GeneratorBase (latent_dim default = 50).
    B = 2
    latent_dim = 50
    hidden = 32
    C, Himg, Wimg = 4, 16, 16
    out_dim = C * Himg * Wimg   # 1024, generated image flattened

    z = jax.random.normal(kz, (B, latent_dim), dtype=jnp.float32)
    w1, b1, w2, b2 = make_params(kp, latent_dim, hidden, out_dim)

    flat = generator_forward(z, w1, b1, w2, b2)
    flat = jax.block_until_ready(flat)
    img = flat.reshape(B, C, Himg, Wimg)   # glue: reshape like a concrete subclass

    # Pure-JAX reference using the same bf16-in / f32-accumulate recipe.
    zb = z.astype(jnp.bfloat16).astype(jnp.float32)
    w1b = w1.astype(jnp.bfloat16).astype(jnp.float32)
    w2b = w2.astype(jnp.bfloat16).astype(jnp.float32)
    h = zb @ w1b + b1
    h = jnp.where(h > 0, h, 0.2 * h)
    h = h.astype(jnp.bfloat16).astype(jnp.float32)
    ref = jnp.tanh(h @ w2b + b2)

    assert img.shape == (B, C, Himg, Wimg)
    assert jnp.max(jnp.abs(flat - ref)) < 2e-2
    print("KERNEL_OK")
</pallas_src>

<mosaic_0001>
module attributes {stable_mosaic.version = 11 : i64} {
  func.func @_gen_kernel(%arg0: i32, %arg1: i32, %arg2: memref<8x128xbf16, #tpu.memory_space<vmem>>, %arg3: memref<128x128xbf16, #tpu.memory_space<vmem>>, %arg4: memref<1x128xf32, #tpu.memory_space<vmem>>, %arg5: memref<128x256xbf16, #tpu.memory_space<vmem>>, %arg6: memref<1x256xf32, #tpu.memory_space<vmem>>, %arg7: memref<8x256xf32, #tpu.memory_space<vmem>>, %arg8: memref<8x128xbf16, #tpu.memory_space<vmem>>) attributes {dimension_semantics = [#tpu.dimension_semantics<parallel>, #tpu.dimension_semantics<arbitrary>], iteration_bounds = array<i64: 1, 4>, scalar_prefetch = 0 : i64, scratch_operands = 1 : i64, tpu.core_type = #tpu.core_type<tc>, window_params = [{transform_indices = @transform_0, window_bounds = array<i64: 8, 128>}, {pipeline_mode = #tpu.pipeline_mode<synchronous>, transform_indices = @transform_1, window_bounds = array<i64: 128, 128>}, {pipeline_mode = #tpu.pipeline_mode<synchronous>, transform_indices = @transform_2, window_bounds = array<i64: 1, 128>}, {transform_indices = @transform_3, window_bounds = array<i64: 128, 256>}, {transform_indices = @transform_4, window_bounds = array<i64: 1, 256>}, {transform_indices = @transform_5, window_bounds = array<i64: 8, 256>}]} {
    %c0_i32 = arith.constant 0 : i32
    %0 = arith.cmpi eq, %arg1, %c0_i32 : i32
    %1 = arith.extui %0 : i1 to i32
    %c0_i32_0 = arith.constant 0 : i32
    %2 = arith.cmpi ne, %1, %c0_i32_0 : i32
    scf.if %2 {
      %c0_8 = arith.constant 0 : index
      %c0_9 = arith.constant 0 : index
      %11 = vector.load %arg2[%c0_8, %c0_9] : memref<8x128xbf16, #tpu.memory_space<vmem>>, vector<8x128xbf16>
      %c0_10 = arith.constant 0 : index
      %c0_11 = arith.constant 0 : index
      %12 = vector.load %arg3[%c0_10, %c0_11] : memref<128x128xbf16, #tpu.memory_space<vmem>>, vector<128x128xbf16>
      %cst_12 = arith.constant dense<0.000000e+00> : vector<8x128xf32>
      %13 = tpu.matmul %11, %12, %cst_12 {dimension_numbers = #tpu.dot_dimension_numbers<[1], [0], [0], [1], [0, 0, 1, 1], [], []>} : vector<8x128xbf16>, vector<128x128xbf16>, vector<8x128xf32> -> vector<8x128xf32>
      %c0_13 = arith.constant 0 : index
      %c0_14 = arith.constant 0 : index
      %14 = vector.load %arg4[%c0_13, %c0_14] : memref<1x128xf32, #tpu.memory_space<vmem>>, vector<1x128xf32>
      %15 = vector.broadcast %14 : vector<1x128xf32> to vector<8x128xf32>
      %16 = arith.addf %13, %15 : vector<8x128xf32>
      %cst_15 = arith.constant 0.000000e+00 : f32
      %17 = vector.broadcast %cst_15 : f32 to vector<8x128xf32>
      %18 = arith.cmpf ogt, %16, %17 : vector<8x128xf32>
      %cst_16 = arith.constant 2.000000e-01 : f32
      %19 = vector.broadcast %cst_16 : f32 to vector<8x128xf32>
      %20 = arith.mulf %19, %16 : vector<8x128xf32>
      %21 = arith.select %18, %16, %20 : vector<8x128xi1>, vector<8x128xf32>
      %22 = arith.truncf %21 : vector<8x128xf32> to vector<8x128xbf16>
      %c0_17 = arith.constant 0 : index
      %c0_18 = arith.constant 0 : index
      %23 = vector.load %arg8[%c0_17, %c0_18] : memref<8x128xbf16, #tpu.memory_space<vmem>>, vector<8x128xbf16>
      tpu.vector_store %arg8[%c0_17, %c0_18], %22 {strides = array<i32>} : memref<8x128xbf16, #tpu.memory_space<vmem>>, vector<8x128xbf16>,
    } else {
    }
    %c0 = arith.constant 0 : index
    %c0_1 = arith.constant 0 : index
    %3 = vector.load %arg8[%c0, %c0_1] : memref<8x128xbf16, #tpu.memory_space<vmem>>, vector<8x128xbf16>
    %c0_2 = arith.constant 0 : index
    %c0_3 = arith.constant 0 : index
    %4 = vector.load %arg5[%c0_2, %c0_3] : memref<128x256xbf16, #tpu.memory_space<vmem>>, vector<128x256xbf16>
    %cst = arith.constant dense<0.000000e+00> : vector<8x256xf32>
    %5 = tpu.matmul %3, %4, %cst {dimension_numbers = #tpu.dot_dimension_numbers<[1], [0], [0], [1], [0, 0, 1, 1], [], []>} : vector<8x128xbf16>, vector<128x256xbf16>, vector<8x256xf32> -> vector<8x256xf32>
    %c0_4 = arith.constant 0 : index
    %c0_5 = arith.constant 0 : index
    %6 = vector.load %arg6[%c0_4, %c0_5] : memref<1x256xf32, #tpu.memory_space<vmem>>, vector<1x256xf32>
    %7 = vector.broadcast %6 : vector<1x256xf32> to vector<8x256xf32>
    %8 = arith.addf %5, %7 : vector<8x256xf32>
    %9 = math.tanh %8 : vector<8x256xf32>
    %c0_6 = arith.constant 0 : index
    %c0_7 = arith.constant 0 : index
    %10 = vector.load %arg7[%c0_6, %c0_7] : memref<8x256xf32, #tpu.memory_space<vmem>>, vector<8x256xf32>
    tpu.vector_store %arg7[%c0_6, %c0_7], %9 {strides = array<i32>} : memref<8x256xf32, #tpu.memory_space<vmem>>, vector<8x256xf32>,
    return
  }
  func.func @transform_0(%arg0: i32, %arg1: i32) -> (i32, i32) {
    %c0_i32 = arith.constant 0 : i32
    %c0_i32_0 = arith.constant 0 : i32
    return %arg0, %c0_i32 : i32, i32
  }
  func.func @transform_1(%arg0: i32, %arg1: i32) -> (i32, i32) {
    %c0_i32 = arith.constant 0 : i32
    %c0_i32_0 = arith.constant 0 : i32
    %c0_i32_1 = arith.constant 0 : i32
    return %c0_i32, %c0_i32_0 : i32, i32
  }
  func.func @transform_2(%arg0: i32, %arg1: i32) -> (i32, i32) {
    %c0_i32 = arith.constant 0 : i32
    %c0_i32_0 = arith.constant 0 : i32
    %c0_i32_1 = arith.constant 0 : i32
    return %c0_i32, %c0_i32_0 : i32, i32
  }
  func.func @transform_3(%arg0: i32, %arg1: i32) -> (i32, i32) {
    %c0_i32 = arith.constant 0 : i32
    %c0_i32_0 = arith.constant 0 : i32
    return %c0_i32, %arg1 : i32, i32
  }
  func.func @transform_4(%arg0: i32, %arg1: i32) -> (i32, i32) {
    %c0_i32 = arith.constant 0 : i32
    %c0_i32_0 = arith.constant 0 : i32
    return %c0_i32, %arg1 : i32, i32
  }
  func.func @transform_5(%arg0: i32, %arg1: i32) -> (i32, i32) {
    %c0_i32 = arith.constant 0 : i32
    return %arg0, %arg1 : i32, i32
  }
}

</mosaic_0001>

<llo_original>
// kernel: tpu_custom_call.1
$region0: #{tpu_custom_call.1}
  #allocation0 [shape = 'u32[]', space=smem, size = 0x4, offset = 0x4, fixed_abs, tag = 'smem constant byte address 0x4 - core index']
  #allocation1 [shape = 'u32[72,128]{1,0:T(1,128)}', space=vmem, size = 0x9000, scoped, tag = 'internal scratch']
  #allocation2 [shape = 'bf16[8,128]{1,0:T(8,128)(2,1)}', space=vmem, size = 0x800, scoped, tag = 'scratch operand']
  %s0 = inlined_call_operand.hbm [shape: bf16[8,128], index: 0, kind: input, shape index: {}]
  %s1 = inlined_call_operand.hbm [shape: bf16[128,128], index: 1, kind: input, shape index: {}]
  %s2 = inlined_call_operand.vmem [shape: f32[1,128], index: 2, kind: input, shape index: {}]
  %s3 = inlined_call_operand.hbm [shape: bf16[128,1024], index: 3, kind: input, shape index: {}]
  %s4 = inlined_call_operand.hbm [shape: f32[1,1024], index: 4, kind: input, shape index: {}]
  %s5 = inlined_call_operand.hbm [shape: f32[8,1024], index: 5, kind: output, shape index: {}]
  %s6 = sld [smem:[#allocation0]]
  $region73: #{tpu_custom_call.1} parent=0
    _
  %s8 = ssub.s32 1, %s6
  %s9 = scalar_select 0, %s8, %s6
  $region1: #{tpu_custom_call.1} parent=0
    #allocation3 [shape = 'u8[2048]{0}', space=vmem, size = 0x800, scoped, tag = 'input window, operand 0, single buffered']
    #allocation4 [shape = 's32[2]{0}', space=sflag, size = 0x8, scoped, tag = 'scoped memory for tpu_custom_call.1']
    #allocation5 [shape = 's32[2]{0}', space=sflag, size = 0x8, scoped, tag = 'scoped memory for tpu_custom_call.1']
    #allocation6 [shape = 'u8[32768]{0}', space=vmem, size = 0x8000, scoped, tag = 'input window, operand 1, single buffered']
    #allocation7 [shape = 's32[1]{0}', space=sflag, size = 0x4, scoped, tag = 'scoped memory for tpu_custom_call.1']
    #allocation8 [shape = 'u8[131072]{0}', space=vmem, size = 0x20000, scoped, tag = 'input window, operand 3']
    #allocation9 [shape = 'u8[2048]{0}', space=vmem, size = 0x800, scoped, tag = 'input window, operand 4']
    #allocation10 [shape = 'u8[16384]{0}', space=vmem, size = 0x4000, scoped, tag = 'output window, operand 0']
    %10 = vsyncpa [#allocation4], 0
    %11 = vsyncpa [#allocation7], 0
    %12 = vsyncpa [#allocation5], 0
    %s13 = scalar_lea.sflag [#allocation5], 1
    %14 = vsyncpa %s13, 0
    loop: start=0, step=1, limit=6
    $region2: #{tpu_custom_call.1} parent=1 // loop_pre_header
      _
    $region3: #{tpu_custom_call.1} parent=1 // loop_header
      %s16 = sphi 0, %s20
      %p17 = scmp.ge.s32.totalorder %s16, 6
      %s23 = sphi 0, %s35
      %s24 = sphi 0, %s31
      %s25 = sphi 0, %s23
      %s26 = sphi 0, %s24
      %s27 = sphi 0, %s25
      %s28 = sphi 0, %s26
      %s38 = sphi 0, %s40
      %s41 = sphi 0, %s38
      %s42 = sphi 0, %s41
      %s58 = sphi 0, %s42
      %s62 = sphi 0, %s62
      %s64 = sphi 0, %s62
      %s65 = sphi 0, %s64
      %s79 = sphi 0, %s65
      %s83 = sphi 0, %s83
      %s85 = sphi 0, %s83
      %s86 = sphi 0, %s85
      %s100 = sphi 0, %s86
      %s106 = sphi 0, %s108
      %s109 = sphi 0, %s106
      %s110 = sphi 0, %s109
      %s126 = sphi 0, %s110
      %s132 = sphi 0, %s134
      %s135 = sphi 0, %s132
      %s136 = sphi 0, %s135
      %s152 = sphi 0, %s136
      %s160 = sphi 0, %s162
      %s163 = sphi 0, %s160
      %s164 = sphi 0, %s163
      %s180 = sphi 0, %s164
    $region4: #{tpu_custom_call.1} parent=1 // loop_header_branch
      %19 = sbr.rel (%p17) target = $region8
    $region5: #{tpu_custom_call.1} parent=1 // loop_body
      %s21 = ssub.s32 %s16, 1
      %s22 = ssub.s32 %s16, 2
      %s29 = sadd.s32 1, %s24
      %p30 = scmp.ge.s32.totalorder %s29, 4
      %s31 = scalar_select %p30, 0, %s29
      %s32 = sadd.s32 1, %s23
      %s33 = scalar_select %p30, %s32, %s23
      %p34 = scmp.ge.s32.totalorder %s33, 1
      %s35 = scalar_select %p34, 0, %s33
      %s36 = ssub.s32 %s23, %s35
      %p37 = scmp.eq.s32.totalorder %s36, 0
      %s39 = sadd.s32 %s38, 1
      %s40 = scalar_select %p37, %s38, %s39
      %p43 = pneg %p37
      %p44 = scmp.eq.s32.totalorder %s16, 3
      %p45 = por %p43, %p44
      %p46 = scmp.ne.s32.totalorder %s38, %s41
      %p47 = scmp.eq.s32.totalorder %s16, 0
      %p48 = por %p46, %p47
      %p49 = scmp.ne.s32.totalorder %s38, %s41
      %p50 = scmp.eq.s32.totalorder %s21, 3
      %p51 = por %p49, %p50
      %p52 = scmp.ne.s32.totalorder %s41, %s42
      %p53 = scmp.eq.s32.totalorder %s21, 0
      %p54 = por %p52, %p53
      %p55 = scmp.ne.s32.totalorder %s41, %s42
      %p56 = scmp.eq.s32.totalorder %s22, 3
      %p57 = por %p55, %p56
      %p59 = scmp.ne.s32.totalorder %s42, %s58
      %p60 = scmp.eq.s32.totalorder %s22, 0
      %p61 = por %p59, %p60
      %s63 = sadd.s32 %s62, 1
      %p66 = scmp.eq.s32.totalorder %s16, 3
      %p67 = scmp.ne.s32.totalorder %s62, %s64
      %p68 = scmp.eq.s32.totalorder %s16, 0
      %p69 = por %p67, %p68
      %p70 = scmp.ne.s32.totalorder %s62, %s64
      %p71 = scmp.eq.s32.totalorder %s21, 3
      %p72 = por %p70, %p71
      %p73 = scmp.ne.s32.totalorder %s64, %s65
      %p74 = scmp.eq.s32.totalorder %s21, 0
      %p75 = por %p73, %p74
      %p76 = scmp.ne.s32.totalorder %s64, %s65
      %p77 = scmp.eq.s32.totalorder %s22, 3
      %p78 = por %p76, %p77
      %p80 = scmp.ne.s32.totalorder %s65, %s79
      %p81 = scmp.eq.s32.totalorder %s22, 0
      %p82 = por %p80, %p81
      %s84 = sadd.s32 %s83, 1
      %p87 = scmp.eq.s32.totalorder %s16, 3
      %p88 = scmp.ne.s32.totalorder %s83, %s85
      %p89 = scmp.eq.s32.totalorder %s16, 0
      %p90 = por %p88, %p89
      %p91 = scmp.ne.s32.totalorder %s83, %s85
      %p92 = scmp.eq.s32.totalorder %s21, 3
      %p93 = por %p91, %p92
      %p94 = scmp.ne.s32.totalorder %s85, %s86
      %p95 = scmp.eq.s32.totalorder %s21, 0
      %p96 = por %p94, %p95
      %p97 = scmp.ne.s32.totalorder %s85, %s86
      %p98 = scmp.eq.s32.totalorder %s22, 3
      %p99 = por %p97, %p98
      %p101 = scmp.ne.s32.totalorder %s86, %s100
      %p102 = scmp.eq.s32.totalorder %s22, 0
      %p103 = por %p101, %p102
      %s104 = ssub.s32 %s24, %s31
      %p105 = scmp.eq.s32.totalorder %s104, 0
      %s107 = sadd.s32 %s106, 1
      %s108 = scalar_select %p105, %s106, %s107
      %p111 = pneg %p105
      %p112 = scmp.eq.s32.totalorder %s16, 3
      %p113 = por %p111, %p112
      %p114 = scmp.ne.s32.totalorder %s106, %s109
      %p115 = scmp.eq.s32.totalorder %s16, 0
      %p116 = por %p114, %p115
      %p117 = scmp.ne.s32.totalorder %s106, %s109
      %p118 = scmp.eq.s32.totalorder %s21, 3
      %p119 = por %p117, %p118
      %p120 = scmp.ne.s32.totalorder %s109, %s110
      %p121 = scmp.eq.s32.totalorder %s21, 0
      %p122 = por %p120, %p121
      %p123 = scmp.ne.s32.totalorder %s109, %s110
      %p124 = scmp.eq.s32.totalorder %s22, 3
      %p125 = por %p123, %p124
      %p127 = scmp.ne.s32.totalorder %s110, %s126
      %p128 = scmp.eq.s32.totalorder %s22, 0
      %p129 = por %p127, %p128
      %s130 = ssub.s32 %s24, %s31
      %p131 = scmp.eq.s32.totalorder %s130, 0
      %s133 = sadd.s32 %s132, 1
      %s134 = scalar_select %p131, %s132, %s133
      %p137 = pneg %p131
      %p138 = scmp.eq.s32.totalorder %s16, 3
      %p139 = por %p137, %p138
      %p140 = scmp.ne.s32.totalorder %s132, %s135
      %p141 = scmp.eq.s32.totalorder %s16, 0
      %p142 = por %p140, %p141
      %p143 = scmp.ne.s32.totalorder %s132, %s135
      %p144 = scmp.eq.s32.totalorder %s21, 3
      %p145 = por %p143, %p144
      %p146 = scmp.ne.s32.totalorder %s135, %s136
      %p147 = scmp.eq.s32.totalorder %s21, 0
      %p148 = por %p146, %p147
      %p149 = scmp.ne.s32.totalorder %s135, %s136
      %p150 = scmp.eq.s32.totalorder %s22, 3
      %p151 = por %p149, %p150
      %p153 = scmp.ne.s32.totalorder %s136, %s152
      %p154 = scmp.eq.s32.totalorder %s22, 0
      %p155 = por %p153, %p154
      %s156 = ssub.s32 %s23, %s35
      %s157 = ssub.s32 %s24, %s31
      %s158 = sor.u32 %s156, %s157
      %p159 = scmp.eq.s32.totalorder %s158, 0
      %s161 = sadd.s32 %s160, 1
      %s162 = scalar_select %p159, %s160, %s161
      %p165 = pneg %p159
      %p166 = scmp.eq.s32.totalorder %s16, 3
      %p167 = por %p165, %p166
      %p168 = scmp.ne.s32.totalorder %s160, %s163
      %p169 = scmp.eq.s32.totalorder %s16, 0
      %p170 = por %p168, %p169
      %p171 = scmp.ne.s32.totalorder %s160, %s163
      %p172 = scmp.eq.s32.totalorder %s21, 3
      %p173 = por %p171, %p172
      %p174 = scmp.ne.s32.totalorder %s163, %s164
      %p175 = scmp.eq.s32.totalorder %s21, 0
      %p176 = por %p174, %p175
      %p177 = scmp.ne.s32.totalorder %s163, %s164
      %p178 = scmp.eq.s32.totalorder %s22, 3
      %p179 = por %p177, %p178
      %p181 = scmp.ne.s32.totalorder %s164, %s180
      %p182 = scmp.eq.s32.totalorder %s22, 0
      %p183 = por %p181, %p182
      %p184 = scmp.le.s32.totalorder 1, %s16
      %p185 = scmp.lt.s32.totalorder %s16, 5
      %p186 = pnand %p184, %p185
      %p187 = pneg %p186
      // Predicated region
      $region9: #{tpu_custom_call.1} parent=5 // pred_check
        _
      $region10: #{tpu_custom_call.1} parent=5 // pred_check_branch
        %189 = sbr.rel (%p186) target = $region12
      $region11: #{tpu_custom_call.1} parent=5 // pred_region
        %s190 = ssub.s32 %s16, 1
        // Predicated region
        $region13: #{tpu_custom_call.1} parent=11 // pred_check
          %p191 = pneg %p54
        $region14: #{tpu_custom_call.1} parent=11 // pred_check_branch
          %193 = sbr.rel (%p191) target = $region16
        $region15: #{tpu_custom_call.1} parent=11 // pred_region
          %195 = vsyncadd [#allocation4], 0
          %s196 = smul.addr %s25, 4
          %s197 = scalar_lea.hbm %s0, %s196
          %s199 = sshll.u32 %s197, 4
          %s200 = int_to_ptr.hbm [resolvable:$true] %s199
          %s201 = sshll.u32 [#allocation3], 4
          %s202 = int_to_ptr.vmem [resolvable:$true] %s201
          %204 = dma.hbm_to_vmem [thread:$0]  %s200, 64, %s202, [#allocation4]
        $region16: #{tpu_custom_call.1} parent=11 // pred_fallthru
          _
        // Predicated region
        $region17: #{tpu_custom_call.1} parent=11 // pred_check
          %p205 = pneg %p75
        $region18: #{tpu_custom_call.1} parent=11 // pred_check_branch
          %207 = sbr.rel (%p205) target = $region20
        $region19: #{tpu_custom_call.1} parent=11 // pred_region
          %209 = vsyncadd [#allocation7], 0
          %s210 = sshll.u32 %s1, 4
          %s211 = int_to_ptr.hbm [resolvable:$true] %s210
          %s212 = sshll.u32 [#allocation6], 4
          %s213 = int_to_ptr.vmem [resolvable:$true] %s212
          %218 = dma.hbm_to_vmem [thread:$0]  %s211, 1024, %s213, [#allocation7], 64, 64, 4
        $region20: #{tpu_custom_call.1} parent=11 // pred_fallthru
          _
        // Predicated region
        $region21: #{tpu_custom_call.1} parent=11 // pred_check
          %p219 = pneg %p96
        $region22: #{tpu_custom_call.1} parent=11 // pred_check_branch
          %221 = sbr.rel (%p219) target = $region24
        $region23: #{tpu_custom_call.1} parent=11 // pred_region
          _
        $region24: #{tpu_custom_call.1} parent=11 // pred_fallthru
          _
      $region12: #{tpu_custom_call.1} parent=5 // pred_fallthru
        _
      %p222 = scmp.lt.s32.totalorder %s16, 4
      // Predicated region
      $region25: #{tpu_custom_call.1} parent=5 // pred_check
        %p223 = pneg %p222
      $region26: #{tpu_custom_call.1} parent=5 // pred_check_branch
        %225 = sbr.rel (%p223) target = $region28
      $region27: #{tpu_custom_call.1} parent=5 // pred_region
        // Predicated region
        $region29: #{tpu_custom_call.1} parent=27 // pred_check
          %p226 = pneg %p116
        $region30: #{tpu_custom_call.1} parent=27 // pred_check_branch
          %228 = sbr.rel (%p226) target = $region32
        $region31: #{tpu_custom_call.1} parent=27 // pred_region
          %s229 = sand.u32 %s16, 1
          %s230 = scalar_lea.sflag [#allocation4], %s229
          %s231 = sand.u32 %s106, 1
          %s232 = smul.addr %s231, 128
          %s233 = scalar_lea.vmem [#allocation8], %s232
          %s234 = smul.u32 2, %s24
          %236 = vsyncadd %s230, 0
          %s237 = smul.addr %s234, 4
          %s238 = scalar_lea.hbm %s3, %s237
          %s239 = sshll.u32 %s238, 4
          %s240 = int_to_ptr.hbm [resolvable:$true] %s239
          %s241 = sshll.u32 %s233, 4
          %s242 = int_to_ptr.vmem [resolvable:$true] %s241
          %247 = dma.hbm_to_vmem [thread:$0]  %s240, 2048, %s242, %s230, 512, 128, 8
        $region32: #{tpu_custom_call.1} parent=27 // pred_fallthru
          _
        // Predicated region
        $region33: #{tpu_custom_call.1} parent=27 // pred_check
          %p248 = pneg %p142
        $region34: #{tpu_custom_call.1} parent=27 // pred_check_branch
          %250 = sbr.rel (%p248) target = $region36
        $region35: #{tpu_custom_call.1} parent=27 // pred_region
          %s251 = sand.u32 %s16, 1
          %s252 = scalar_lea.sflag [#allocation4], %s251
          %s253 = sand.u32 %s132, 1
          %s254 = smul.addr %s253, 2
          %s255 = scalar_lea.vmem [#allocation9], %s254
          %s256 = smul.u32 2, %s24
          %258 = vsyncadd %s252, 0
          %s259 = scalar_lea.hbm %s4, %s256
          %s261 = sshll.u32 %s259, 4
          %s262 = int_to_ptr.hbm [resolvable:$true] %s261
          %s263 = sshll.u32 %s255, 4
          %s264 = int_to_ptr.vmem [resolvable:$true] %s263
          %266 = dma.hbm_to_vmem [thread:$0]  %s262, 32, %s264, %s252
        $region36: #{tpu_custom_call.1} parent=27 // pred_fallthru
          _
      $region28: #{tpu_custom_call.1} parent=5 // pred_fallthru
        _
      %p267 = scmp.le.s32.totalorder 1, %s16
      %p268 = scmp.lt.s32.totalorder %s16, 5
      %p269 = pnand %p267, %p268
      %p270 = pneg %p269
      // Predicated region
      $region37: #{tpu_custom_call.1} parent=5 // pred_check
        _
      $region38: #{tpu_custom_call.1} parent=5 // pred_check_branch
        %272 = sbr.rel (%p269) target = $region40
      $region39: #{tpu_custom_call.1} parent=5 // pred_region
        %s273 = ssub.s32 %s16, 1
        // Predicated region
        $region41: #{tpu_custom_call.1} parent=39 // pred_check
          %p274 = pneg %p54
        $region42: #{tpu_custom_call.1} parent=39 // pred_check_branch
          %276 = sbr.rel (%p274) target = $region44
        $region43: #{tpu_custom_call.1} parent=39 // pred_region
          %278 = dma.done [#allocation4], 64
        $region44: #{tpu_custom_call.1} parent=39 // pred_fallthru
          _
        // Predicated region
        $region45: #{tpu_custom_call.1} parent=39 // pred_check
          %p279 = pneg %p75
        $region46: #{tpu_custom_call.1} parent=39 // pred_check_branch
          %281 = sbr.rel (%p279) target = $region48
        $region47: #{tpu_custom_call.1} parent=39 // pred_region
          %283 = dma.done [#allocation7], 1024
        $region48: #{tpu_custom_call.1} parent=39 // pred_fallthru
          _
        %s284 = sand.u32 %s21, 1
        %s285 = scalar_lea.sflag [#allocation4], %s284
        %s286 = sand.u32 %s109, 1
        %s287 = smul.addr %s286, 128
        %s288 = scalar_lea.vmem [#allocation8], %s287
        // Predicated region
        $region49: #{tpu_custom_call.1} parent=39 // pred_check
          %p289 = pneg %p122
        $region50: #{tpu_custom_call.1} parent=39 // pred_check_branch
          %291 = sbr.rel (%p289) target = $region52
        $region51: #{tpu_custom_call.1} parent=39 // pred_region
          %293 = dma.done %s285, 2048
        $region52: #{tpu_custom_call.1} parent=39 // pred_fallthru
          _
        %s294 = sand.u32 %s21, 1
        %s295 = scalar_lea.sflag [#allocation4], %s294
        %s296 = sand.u32 %s135, 1
        %s297 = smul.addr %s296, 2
        %s298 = scalar_lea.vmem [#allocation9], %s297
        // Predicated region
        $region53: #{tpu_custom_call.1} parent=39 // pred_check
          %p299 = pneg %p148
        $region54: #{tpu_custom_call.1} parent=39 // pred_check_branch
          %301 = sbr.rel (%p299) target = $region56
        $region55: #{tpu_custom_call.1} parent=39 // pred_region
          %303 = dma.done %s295, 32
        $region56: #{tpu_custom_call.1} parent=39 // pred_fallthru
          _
        %p304 = pneg %p54
        %p305 = pneg %p51
        %p306 = pneg %p75
        %p307 = pneg %p72
        %p308 = pneg %p96
        %p309 = pneg %p93
        %s310 = sand.u32 %s21, 1
        %s311 = scalar_lea.sflag [#allocation4], %s310
        %s312 = sand.u32 %s109, 1
        %s313 = smul.addr %s312, 128
        %s314 = scalar_lea.vmem [#allocation8], %s313
        %p315 = pneg %p122
        %p316 = pneg %p119
        %s317 = sand.u32 %s21, 1
        %s318 = scalar_lea.sflag [#allocation4], %s317
        %s319 = sand.u32 %s135, 1
        %s320 = smul.addr %s319, 2
        %s321 = scalar_lea.vmem [#allocation9], %s320
        %p322 = pneg %p148
        %p323 = pneg %p145
        %p324 = pneg %p176
        %p325 = pneg %p173
        %s326 = sand.u32 %s163, 1
        %s327 = scalar_lea.sflag [#allocation5], %s326
        %s328 = sand.u32 %s163, 1
        %s329 = smul.addr %s328, 16
        %s330 = scalar_lea.vmem [#allocation10], %s329
        %s331 = smul.u32 2, %s26
        %s332 = smul.u32 2, %s26
        %s333 = smul.u32 2, %s26
        %p334 = scmp.eq.s32.totalorder %s26, 0
        // Predicated region
        $region57: #{tpu_custom_call.1} parent=39 // pred_check
          %p335 = pneg %p334
        $region58: #{tpu_custom_call.1} parent=39 // pred_check_branch
          %337 = sbr.rel (%p335) target = $region60
        $region59: #{tpu_custom_call.1} parent=39 // pred_region
          %v338 = vld [vmem:[#allocation3] sm:$0xf]
          %v339 = vld [vmem:[#allocation6] sm:$0xf]
          %v340 = vld [vmem:[#allocation6 + $0x4] sm:$0xf]
          %v341 = vld [vmem:[#allocation6 + $0x8] sm:$0xf]
          %v342 = vld [vmem:[#allocation6 + $0xc] sm:$0xf]
          %v343 = vld [vmem:[#allocation6 + $0x10] sm:$0xf]
          %v344 = vld [vmem:[#allocation6 + $0x14] sm:$0xf]
          %v345 = vld [vmem:[#allocation6 + $0x18] sm:$0xf]
          %v346 = vld [vmem:[#allocation6 + $0x1c] sm:$0xf]
          %v347 = vld [vmem:[#allocation6 + $0x20] sm:$0xf]
          %v348 = vld [vmem:[#allocation6 + $0x24] sm:$0xf]
          %v349 = vld [vmem:[#allocation6 + $0x28] sm:$0xf]
          %v350 = vld [vmem:[#allocation6 + $0x2c] sm:$0xf]
          %v351 = vld [vmem:[#allocation6 + $0x30] sm:$0xf]
          %v352 = vld [vmem:[#allocation6 + $0x34] sm:$0xf]
          %v353 = vld [vmem:[#allocation6 + $0x38] sm:$0xf]
          %v354 = vld [vmem:[#allocation6 + $0x3c] sm:$0xf]
          %v355 = vld [vmem:[%s2] sm:$0x1]
          %v357 = vperm.slane %v355, 0
          %v375 = vunpack.c.l.b16 %v339
          %v376 = vunpack.c.l.b16 %v340
          %v377 = vunpack.c.l.b16 %v341
          %v378 = vunpack.c.l.b16 %v342
          %v379 = vunpack.c.l.b16 %v343
          %v380 = vunpack.c.l.b16 %v344
          %v381 = vunpack.c.l.b16 %v345
          %v382 = vunpack.c.l.b16 %v346
          %v383 = vunpack.c.l.b16 %v347
          %v384 = vunpack.c.l.b16 %v348
          %v385 = vunpack.c.l.b16 %v349
          %v386 = vunpack.c.l.b16 %v350
          %v387 = vunpack.c.l.b16 %v351
          %v388 = vunpack.c.l.b16 %v352
          %v389 = vunpack.c.l.b16 %v353
          %v390 = vunpack.c.l.b16 %v354
          %v391 = vpack.c.b16 %v376, %v375
          %v392 = vpack.c.b16 %v378, %v377
          %v393 = vpack.c.b16 %v380, %v379
          %v394 = vpack.c.b16 %v382, %v381
          %v395 = vpack.c.b16 %v384, %v383
          %v396 = vpack.c.b16 %v386, %v385
          %v397 = vpack.c.b16 %v388, %v387
          %v398 = vpack.c.b16 %v390, %v389
          %407 = vmatpush.bf16.msra.mxu0 %v398
          %408 = vmatpush.bf16.msra.mxu0 %v397
          %409 = vmatpush.bf16.msra.mxu0 %v396
          %410 = vmatpush.bf16.msra.mxu0 %v395
          %411 = vmatpush.bf16.msra.mxu0 %v394
          %412 = vmatpush.bf16.msra.mxu0 %v393
          %413 = vmatpush.bf16.msra.mxu0 %v392
          %414 = vmatpush.bf16.msra.mxu0 %v391
          %415 = vmatmul.bf16.gmra.mxu0 %v338
          %v416 = vpop.f32.mrf.mxu0
          %v417 = vadd.f32 %v357, %v416
          %v418 = vpop.f32.mrf.mxu0
          %419 = vdwg.mxu0
          %vm420 = vcmp.gt.f32.partialorder %v417, 0.0
          %v421 = vmul.f32 %v417, 0.2
          %v422 = vsel %vm420, %v417, %v421
          %v423 = vpack.c.bf16 %v422, %v422
          %424 = vst [vmem:[#allocation2] sm:$0xf] %v423
        $region60: #{tpu_custom_call.1} parent=39 // pred_fallthru
          _
        %v425 = vld [vmem:[#allocation2] sm:$0xf]
        %v426 = vld [vmem:[%s288] sm:$0xff]
        %v427 = vld [vmem:[%s288 + $0x8] sm:$0xff]
        %v428 = vld [vmem:[%s288 + $0x10] sm:$0xff]
        %v429 = vld [vmem:[%s288 + $0x18] sm:$0xff]
        %v430 = vld [vmem:[%s288 + $0x20] sm:$0xff]
        %v431 = vld [vmem:[%s288 + $0x28] sm:$0xff]
        %v432 = vld [vmem:[%s288 + $0x30] sm:$0xff]
        %v433 = vld [vmem:[%s288 + $0x38] sm:$0xff]
        %v434 = vld [vmem:[%s288 + $0x40] sm:$0xff]
        %v435 = vld [vmem:[%s288 + $0x48] sm:$0xff]
        %v436 = vld [vmem:[%s288 + $0x50] sm:$0xff]
        %v437 = vld [vmem:[%s288 + $0x58] sm:$0xff]
        %v438 = vld [vmem:[%s288 + $0x60] sm:$0xff]
        %v439 = vld [vmem:[%s288 + $0x68] sm:$0xff]
        %v440 = vld [vmem:[%s288 + $0x70] sm:$0xff]
        %v441 = vld [vmem:[%s288 + $0x78] sm:$0xff]
        %v442 = vld [vmem:[%s298] sm:$0x3]
        %v444 = vperm.slane %v442, 0
        %v445 = vperm.slane %v442, 1
        %v464 = vunpack.c.l.b16 %v426
        %v465 = vunpack.c.h.b16 %v426
        %v466 = vunpack.c.l.b16 %v427
        %v467 = vunpack.c.h.b16 %v427
        %v468 = vunpack.c.l.b16 %v428
        %v469 = vunpack.c.h.b16 %v428
        %v470 = vunpack.c.l.b16 %v429
        %v471 = vunpack.c.h.b16 %v429
        %v472 = vunpack.c.l.b16 %v430
        %v473 = vunpack.c.h.b16 %v430
        %v474 = vunpack.c.l.b16 %v431
        %v475 = vunpack.c.h.b16 %v431
        %v476 = vunpack.c.l.b16 %v432
        %v477 = vunpack.c.h.b16 %v432
        %v478 = vunpack.c.l.b16 %v433
        %v479 = vunpack.c.h.b16 %v433
        %v480 = vunpack.c.l.b16 %v434
        %v481 = vunpack.c.h.b16 %v434
        %v482 = vunpack.c.l.b16 %v435
        %v483 = vunpack.c.h.b16 %v435
        %v484 = vunpack.c.l.b16 %v436
        %v485 = vunpack.c.h.b16 %v436
        %v486 = vunpack.c.l.b16 %v437
        %v487 = vunpack.c.h.b16 %v437
        %v488 = vunpack.c.l.b16 %v438
        %v489 = vunpack.c.h.b16 %v438
        %v490 = vunpack.c.l.b16 %v439
        %v491 = vunpack.c.h.b16 %v439
        %v492 = vunpack.c.l.b16 %v440
        %v493 = vunpack.c.h.b16 %v440
        %v494 = vunpack.c.l.b16 %v441
        %v495 = vunpack.c.h.b16 %v441
        %v496 = vpack.c.b16 %v466, %v464
        %v497 = vpack.c.b16 %v467, %v465
        %v498 = vpack.c.b16 %v470, %v468
        %v499 = vpack.c.b16 %v471, %v469
        %v500 = vpack.c.b16 %v474, %v472
        %v501 = vpack.c.b16 %v475, %v473
        %v502 = vpack.c.b16 %v478, %v476
        %v503 = vpack.c.b16 %v479, %v477
        %v504 = vpack.c.b16 %v482, %v480
        %v505 = vpack.c.b16 %v483, %v481
        %v506 = vpack.c.b16 %v486, %v484
        %v507 = vpack.c.b16 %v487, %v485
        %v508 = vpack.c.b16 %v490, %v488
        %v509 = vpack.c.b16 %v491, %v489
        %v510 = vpack.c.b16 %v494, %v492
        %v511 = vpack.c.b16 %v495, %v493
        %528 = vmatpush.bf16.msra.mxu0 %v510
        %529 = vmatpush.bf16.msra.mxu0 %v508
        %530 = vmatpush.bf16.msra.mxu0 %v506
        %531 = vmatpush.bf16.msra.mxu0 %v504
        %532 = vmatpush.bf16.msra.mxu0 %v502
        %533 = vmatpush.bf16.msra.mxu0 %v500
        %534 = vmatpush.bf16.msra.mxu0 %v498
        %535 = vmatpush.bf16.msra.mxu0 %v496
        %536 = vmatmul.bf16.gmra.mxu0 %v425
        %v537 = vpop.f32.mrf.mxu0
        %v538 = vadd.f32 %v444, %v537
        %v539 = vpop.f32.mrf.mxu0
        %540 = vdwg.mxu0
        %541 = vmatpush.bf16.msra.mxu0 %v511
        %542 = vmatpush.bf16.msra.mxu0 %v509
        %543 = vmatpush.bf16.msra.mxu0 %v507
        %544 = vmatpush.bf16.msra.mxu0 %v505
        %545 = vmatpush.bf16.msra.mxu0 %v503
        %546 = vmatpush.bf16.msra.mxu0 %v501
        %547 = vmatpush.bf16.msra.mxu0 %v499
        %548 = vmatpush.bf16.msra.mxu0 %v497
        %549 = vmatmul.bf16.gmra.mxu0 %v425
        %v550 = vpop.f32.mrf.mxu0
        %v551 = vadd.f32 %v445, %v550
        %v552 = vpop.f32.mrf.mxu0
        %553 = vdwg.mxu0
        %v554 = vtanh.pop %v538
        %v555 = vtanh.pop %v551
        %556 = vst [vmem:[%s330] sm:$0xff] %v554
        %557 = vst [vmem:[%s330 + $0x8] sm:$0xff] %v555
        %s558 = sand.u32 %s163, 1
        %s559 = scalar_lea.sflag [#allocation5], %s558
        %s560 = sand.u32 %s163, 1
        %s561 = smul.addr %s560, 16
        %s562 = scalar_lea.vmem [#allocation10], %s561
        // Predicated region
        $region61: #{tpu_custom_call.1} parent=39 // pred_check
          %p563 = pneg %p173
        $region62: #{tpu_custom_call.1} parent=39 // pred_check_branch
          %565 = sbr.rel (%p563) target = $region64
        $region63: #{tpu_custom_call.1} parent=39 // pred_region
          %s566 = smul.u32 2, %s26
          %568 = vsyncadd %s559, 0
          %s569 = smul.addr %s25, 8
          %s570 = sadd.s32 %s566, %s569
          %s571 = smul.addr %s570, 8
          %s572 = scalar_lea.hbm %s5, %s571
          %s574 = sshll.u32 %s562, 4
          %s575 = int_to_ptr.vmem [resolvable:$true] %s574
          %s576 = sshll.u32 %s572, 4
          %s577 = int_to_ptr.hbm [resolvable:$true] %s576
          %579 = dma.vmem_to_hbm [thread:$0]  %s575, 256, %s577, %s559
        $region64: #{tpu_custom_call.1} parent=39 // pred_fallthru
          _
      $region40: #{tpu_custom_call.1} parent=5 // pred_fallthru
        _
      %p580 = scmp.le.s32.totalorder 2, %s16
      // Predicated region
      $region65: #{tpu_custom_call.1} parent=5 // pred_check
        %p581 = pneg %p580
      $region66: #{tpu_custom_call.1} parent=5 // pred_check_branch
        %583 = sbr.rel (%p581) target = $region68
      $region67: #{tpu_custom_call.1} parent=5 // pred_region
        %s584 = ssub.s32 %s16, 2
        // Predicated region
        $region69: #{tpu_custom_call.1} parent=67 // pred_check
          %p585 = pneg %p179
        $region70: #{tpu_custom_call.1} parent=67 // pred_check_branch
          %587 = sbr.rel (%p585) target = $region72
        $region71: #{tpu_custom_call.1} parent=67 // pred_region
          %s588 = sand.u32 %s164, 1
          %s589 = scalar_lea.sflag [#allocation5], %s588
          %s590 = sand.u32 %s164, 1
          %s591 = smul.addr %s590, 16
          %s592 = scalar_lea.vmem [#allocation10], %s591
          %594 = dma.done %s589, 256
        $region72: #{tpu_custom_call.1} parent=67 // pred_fallthru
          _
      $region68: #{tpu_custom_call.1} parent=5 // pred_fallthru
        _
    $region6: #{tpu_custom_call.1} parent=1 // loop_footer
      %s20 = sadd.s32 1, %s16
    $region7: #{tpu_custom_call.1} parent=1 // loop_footer_branch
      %15 = sbr.rel target = $region3
    $region8: #{tpu_custom_call.1} parent=1 // loop_exit
      _
    %595 = vsyncpa [#allocation4], 1
    %s596 = scalar_lea.sflag [#allocation4], 1
    %597 = vsyncpa %s596, 1
    %598 = vsyncpa [#allocation7], 1
    %599 = vsyncpa [#allocation5], 1
    %s600 = scalar_lea.sflag [#allocation5], 1
    %601 = vsyncpa %s600, 1

</llo_original>
